<compile_context>
chip_gen: v5e
topology: v5e:2x2
jax: 0.10.0
libtpu: 0.0.40
codegen_flags: <defaults>
</compile_context>

<pallas_src>
import functools
import math

import jax
import jax.numpy as jnp
from jax.experimental import pallas as pl
from jax.experimental.pallas import tpu as pltpu


def _round_up(x, m):
    return (x + m - 1) // m * m


def _time_embed_kernel(t_ref, fp_ref, w1_ref, b_ref, w2_ref, o_ref):
    # t_ref : (TILE_B, 1)   f32 timestep values
    # fp_ref: (2, Dp)       row 0 = per-lane frequency (0 in padded lanes),
    #                       row 1 = per-lane phase (0 on sin lanes, pi/2 on cos lanes, 0 padded)
    # w1_ref: (Dp, Np)      pre-transposed, zero-padded Linear(d_model, dim) weight
    # b_ref : (2, Np)       row 0 = b1, row 1 = b2 (f32)
    # w2_ref: (Np, Np)      pre-transposed, zero-padded Linear(dim, dim) weight
    # o_ref : (TILE_B, Np)
    freq = fp_ref[0:1, :]
    phase = fp_ref[1:2, :]
    # Fused sinusoidal embedding: sin(t*f) on even lanes, sin(t*f + pi/2) = cos(t*f) on odd
    # lanes, sin(0) = 0 on padded lanes (single EUP transcendental per element).
    x = jnp.sin(t_ref[...] * freq + phase)                      # (TILE_B, Dp) f32

    w_dtype = w1_ref.dtype
    h = jnp.dot(x.astype(w_dtype), w1_ref[...],
                preferred_element_type=jnp.float32) + b_ref[0:1, :]
    h = h * jax.nn.sigmoid(h)                                    # Swish in f32
    out = jnp.dot(h.astype(w_dtype), w2_ref[...],
                  preferred_element_type=jnp.float32) + b_ref[1:2, :]
    o_ref[...] = out.astype(o_ref.dtype)


def prepare_time_embedding_params(w1, b1, w2, b2, param_dtype=jnp.float32):
    """One-time parameter preprocessing (run outside the jitted forward).

    w1: (dim, d_model), b1: (dim,)   -- PyTorch (out_features, in_features) layout.
    w2: (dim, dim),     b2: (dim,)
    param_dtype: jnp.float32 (default) or jnp.bfloat16 (recommended for large dim on v7x).
    Returns (fp, w1_t, b, w2_t) padded/lane-dense arrays for time_embedding_forward.
    """
    dim, d_model = w1.shape
    assert d_model % 2 == 0
    d_model_pad = _round_up(d_model, 128)
    dim_pad = _round_up(dim, 128)
    f32 = jnp.float32

    # Per-lane frequency / phase rows mirroring the PyTorch table construction:
    #   f_k = exp(-(2k / d_model) * ln(10000)); lane 2k -> sin, lane 2k+1 -> cos.
    k = jnp.arange(d_model // 2, dtype=f32)
    f_k = jnp.exp(-(2.0 * k / d_model) * math.log(10000.0))            # (d_model//2,)
    freq = jnp.repeat(f_k, 2)                                          # (d_model,)
    phase = jnp.tile(jnp.array([0.0, math.pi / 2.0], f32), d_model // 2)
    # Padded lanes: freq = 0, phase = 0 -> sin(0) = 0 exactly (inert under zero W1 rows).
    fp = jnp.zeros((2, d_model_pad), f32)
    fp = fp.at[0, :d_model].set(freq).at[1, :d_model].set(phase)

    # Pre-transposed, zero-padded weights; biases stacked into one (2, Np) f32 row pair.
    w1_t = jnp.zeros((d_model_pad, dim_pad), param_dtype).at[:d_model, :dim].set(
        w1.T.astype(param_dtype))
    w2_t = jnp.zeros((dim_pad, dim_pad), param_dtype).at[:dim, :dim].set(
        w2.T.astype(param_dtype))
    b = jnp.zeros((2, dim_pad), f32)
    b = b.at[0, :dim].set(b1.astype(f32)).at[1, :dim].set(b2.astype(f32))
    return fp, w1_t, b, w2_t


def time_embedding_forward(t, fp, w1_t, b, w2_t, *, dim):
    """TimeEmbedding.forward.  t: (B,) integer timestep indices.  Returns (B, dim) f32."""
    d_model_pad, dim_pad = w1_t.shape
    B = t.shape[0]
    f32 = jnp.float32

    # Batch tiling: up to 512 rows per step (sublane-aligned), chosen to minimize padding;
    # force >=2 grid steps when B >= 64 so v7x's second TensorCore gets work.
    max_tile = 512
    min_steps = 2 if B >= 64 else 1
    num_steps = max(pl.cdiv(B, max_tile), min_steps)
    tile_b = _round_up(pl.cdiv(B, num_steps), 8)
    b_pad = _round_up(B, tile_b)

    # Timesteps as a padded f32 column (exact for indices < 2^24 -- fine for diffusion T).
    t_col = jnp.zeros((b_pad, 1), f32).at[:B, 0].set(t.astype(f32))

    grid = (b_pad // tile_b,)
    resident = lambda i: (0, 0)   # constant block index -> stays in VMEM across steps

    # VMEM budget: resident params (single-buffered) + double-buffered t/out tiles + slack.
    nbytes = lambda a: a.size * a.dtype.itemsize
    resident_bytes = nbytes(fp) + nbytes(w1_t) + nbytes(b) + nbytes(w2_t)
    stream_bytes = 2 * (tile_b * 1 + tile_b * dim_pad) * 4
    vmem_limit = int(min(48 << 20, max(32 << 20, 2 * (resident_bytes + stream_bytes))))

    out = pl.pallas_call(
        _time_embed_kernel,
        out_shape=jax.ShapeDtypeStruct((b_pad, dim_pad), f32),
        grid=grid,
        in_specs=[
            pl.BlockSpec((tile_b, 1), lambda i: (i, 0)),                 # t column (tiled)
            pl.BlockSpec((2, d_model_pad), resident,
                         pipeline_mode=pl.Buffered(buffer_count=1)),     # freq + phase
            pl.BlockSpec((d_model_pad, dim_pad), resident,
                         pipeline_mode=pl.Buffered(buffer_count=1)),     # W1^T
            pl.BlockSpec((2, dim_pad), resident,
                         pipeline_mode=pl.Buffered(buffer_count=1)),     # b1 + b2
            pl.BlockSpec((dim_pad, dim_pad), resident,
                         pipeline_mode=pl.Buffered(buffer_count=1)),     # W2^T
        ],
        out_specs=pl.BlockSpec((tile_b, dim_pad), lambda i: (i, 0)),     # lane-dense output
        compiler_params=pltpu.CompilerParams(
            dimension_semantics=("parallel",),   # shard batch across TCs on v7x
            vmem_limit_bytes=vmem_limit,
        ),
    )(t_col, fp, w1_t, b, w2_t)

    return out[:B, :dim]


def make_sinusoidal_table(T, d_model):
    """Exactly mirrors the PyTorch construction in TimeEmbedding.__init__ (reference only)."""
    assert d_model % 2 == 0
    emb = jnp.arange(0, d_model, 2, dtype=jnp.float32) / d_model * math.log(10000.0)
    emb = jnp.exp(-emb)                                      # (d_model//2,)
    pos = jnp.arange(T, dtype=jnp.float32)                   # (T,)
    emb = pos[:, None] * emb[None, :]                        # (T, d_model//2)
    emb = jnp.stack([jnp.sin(emb), jnp.cos(emb)], axis=-1)   # (T, d_model//2, 2)
    return emb.reshape(T, d_model)                           # (T, d_model)


def xavier_uniform(key, fan_out, fan_in, dtype=jnp.float32):
    """torch.nn.init.xavier_uniform_ for a (fan_out, fan_in) Linear weight."""
    bound = math.sqrt(6.0 / (fan_in + fan_out))
    return jax.random.uniform(key, (fan_out, fan_in), dtype, -bound, bound)


if __name__ == "__main__":
    # Small, module-consistent shapes: T timesteps, d_model sinusoid width, dim MLP width.
    T, d_model, dim = 16, 32, 64
    B = 8

    key = jax.random.PRNGKey(0)
    k1, k2, kt = jax.random.split(key, 3)

    w1 = xavier_uniform(k1, dim, d_model)                    # Linear(d_model, dim).weight
    b1 = jnp.zeros((dim,), jnp.float32)                      # init.zeros_
    w2 = xavier_uniform(k2, dim, dim)                        # Linear(dim, dim).weight
    b2 = jnp.zeros((dim,), jnp.float32)

    t = jax.random.randint(kt, (B,), 0, T, dtype=jnp.int32)  # timestep indices

    # One-time parameter preprocessing (pad/transpose/freq/phase), hoisted out of forward.
    params = prepare_time_embedding_params(w1, b1, w2, b2)   # param_dtype=jnp.bfloat16 for big dim on v7x

    fwd = jax.jit(functools.partial(time_embedding_forward, dim=dim))
    out = jax.block_until_ready(fwd(t, *params))

    # Pure-JAX reference (same math as the PyTorch module: table lookup -> MLP).
    emb_table = make_sinusoidal_table(T, d_model)
    x_ref = jnp.take(emb_table, t, axis=0)
    h_ref = x_ref @ w1.T + b1
    h_ref = h_ref * jax.nn.sigmoid(h_ref)
    ref = h_ref @ w2.T + b2

    assert out.shape == (B, dim)
    max_err = float(jnp.max(jnp.abs(out - ref)))
    assert max_err < 5e-4, f"max abs err {max_err}"

    print("KERNEL_OK")
</pallas_src>

<mosaic_0001>
module attributes {stable_mosaic.version = 11 : i64} {
  func.func @_time_embed_kernel(%arg0: i32, %arg1: memref<8x1xf32, #tpu.memory_space<vmem>>, %arg2: memref<2x128xf32, #tpu.memory_space<vmem>>, %arg3: memref<128x128xf32, #tpu.memory_space<vmem>>, %arg4: memref<2x128xf32, #tpu.memory_space<vmem>>, %arg5: memref<128x128xf32, #tpu.memory_space<vmem>>, %arg6: memref<8x128xf32, #tpu.memory_space<vmem>>) attributes {dimension_semantics = [#tpu.dimension_semantics<parallel>], iteration_bounds = array<i64: 1>, scalar_prefetch = 0 : i64, scratch_operands = 0 : i64, tpu.core_type = #tpu.core_type<tc>, window_params = [{transform_indices = @transform_0, window_bounds = array<i64: 8, 1>}, {pipeline_mode = #tpu.pipeline_mode<synchronous>, transform_indices = @transform_1, window_bounds = array<i64: 2, 128>}, {pipeline_mode = #tpu.pipeline_mode<synchronous>, transform_indices = @transform_2, window_bounds = array<i64: 128, 128>}, {pipeline_mode = #tpu.pipeline_mode<synchronous>, transform_indices = @transform_3, window_bounds = array<i64: 2, 128>}, {pipeline_mode = #tpu.pipeline_mode<synchronous>, transform_indices = @transform_4, window_bounds = array<i64: 128, 128>}, {transform_indices = @transform_5, window_bounds = array<i64: 8, 128>}]} {
    %c0 = arith.constant 0 : index
    %c0_0 = arith.constant 0 : index
    %0 = vector.load %arg2[%c0, %c0_0] : memref<2x128xf32, #tpu.memory_space<vmem>>, vector<1x128xf32>
    %c1 = arith.constant 1 : index
    %c0_1 = arith.constant 0 : index
    %1 = vector.load %arg2[%c1, %c0_1] : memref<2x128xf32, #tpu.memory_space<vmem>>, vector<1x128xf32>
    %c0_2 = arith.constant 0 : index
    %c0_3 = arith.constant 0 : index
    %2 = vector.load %arg1[%c0_2, %c0_3] : memref<8x1xf32, #tpu.memory_space<vmem>>, vector<8x1xf32>
    %3 = vector.broadcast %2 : vector<8x1xf32> to vector<8x128xf32>
    %4 = vector.broadcast %0 : vector<1x128xf32> to vector<8x128xf32>
    %5 = arith.mulf %3, %4 : vector<8x128xf32>
    %6 = vector.broadcast %1 : vector<1x128xf32> to vector<8x128xf32>
    %7 = arith.addf %5, %6 : vector<8x128xf32>
    %8 = math.sin %7 : vector<8x128xf32>
    %c0_4 = arith.constant 0 : index
    %c0_5 = arith.constant 0 : index
    %9 = vector.load %arg3[%c0_4, %c0_5] : memref<128x128xf32, #tpu.memory_space<vmem>>, vector<128x128xf32>
    %cst = arith.constant dense<0.000000e+00> : vector<8x128xf32>
    %10 = tpu.matmul %8, %9, %cst {dimension_numbers = #tpu.dot_dimension_numbers<[1], [0], [0], [1], [0, 0, 1, 1], [], []>} : vector<8x128xf32>, vector<128x128xf32>, vector<8x128xf32> -> vector<8x128xf32>
    %c0_6 = arith.constant 0 : index
    %c0_7 = arith.constant 0 : index
    %11 = vector.load %arg4[%c0_6, %c0_7] : memref<2x128xf32, #tpu.memory_space<vmem>>, vector<1x128xf32>
    %12 = vector.broadcast %11 : vector<1x128xf32> to vector<8x128xf32>
    %13 = arith.addf %10, %12 : vector<8x128xf32>
    %14 = arith.negf %13 : vector<8x128xf32>
    %15 = math.exp %14 : vector<8x128xf32>
    %cst_8 = arith.constant 1.000000e+00 : f32
    %16 = vector.broadcast %cst_8 : f32 to vector<8x128xf32>
    %17 = arith.addf %16, %15 : vector<8x128xf32>
    %18 = arith.divf %16, %17 : vector<8x128xf32>
    %19 = arith.mulf %13, %18 : vector<8x128xf32>
    %c0_9 = arith.constant 0 : index
    %c0_10 = arith.constant 0 : index
    %20 = vector.load %arg5[%c0_9, %c0_10] : memref<128x128xf32, #tpu.memory_space<vmem>>, vector<128x128xf32>
    %cst_11 = arith.constant dense<0.000000e+00> : vector<8x128xf32>
    %21 = tpu.matmul %19, %20, %cst_11 {dimension_numbers = #tpu.dot_dimension_numbers<[1], [0], [0], [1], [0, 0, 1, 1], [], []>} : vector<8x128xf32>, vector<128x128xf32>, vector<8x128xf32> -> vector<8x128xf32>
    %c1_12 = arith.constant 1 : index
    %c0_13 = arith.constant 0 : index
    %22 = vector.load %arg4[%c1_12, %c0_13] : memref<2x128xf32, #tpu.memory_space<vmem>>, vector<1x128xf32>
    %23 = vector.broadcast %22 : vector<1x128xf32> to vector<8x128xf32>
    %24 = arith.addf %21, %23 : vector<8x128xf32>
    %c0_14 = arith.constant 0 : index
    %c0_15 = arith.constant 0 : index
    %25 = vector.load %arg6[%c0_14, %c0_15] : memref<8x128xf32, #tpu.memory_space<vmem>>, vector<8x128xf32>
    tpu.vector_store %arg6[%c0_14, %c0_15], %24 {strides = array<i32>} : memref<8x128xf32, #tpu.memory_space<vmem>>, vector<8x128xf32>,
    return
  }
  func.func @transform_0(%arg0: i32) -> (i32, i32) {
    %c0_i32 = arith.constant 0 : i32
    %c0_i32_0 = arith.constant 0 : i32
    return %arg0, %c0_i32 : i32, i32
  }
  func.func @transform_1(%arg0: i32) -> (i32, i32) {
    %c0_i32 = arith.constant 0 : i32
    %c0_i32_0 = arith.constant 0 : i32
    %c0_i32_1 = arith.constant 0 : i32
    return %c0_i32, %c0_i32_0 : i32, i32
  }
  func.func @transform_2(%arg0: i32) -> (i32, i32) {
    %c0_i32 = arith.constant 0 : i32
    %c0_i32_0 = arith.constant 0 : i32
    %c0_i32_1 = arith.constant 0 : i32
    return %c0_i32, %c0_i32_0 : i32, i32
  }
  func.func @transform_3(%arg0: i32) -> (i32, i32) {
    %c0_i32 = arith.constant 0 : i32
    %c0_i32_0 = arith.constant 0 : i32
    %c0_i32_1 = arith.constant 0 : i32
    return %c0_i32, %c0_i32_0 : i32, i32
  }
  func.func @transform_4(%arg0: i32) -> (i32, i32) {
    %c0_i32 = arith.constant 0 : i32
    %c0_i32_0 = arith.constant 0 : i32
    %c0_i32_1 = arith.constant 0 : i32
    return %c0_i32, %c0_i32_0 : i32, i32
  }
  func.func @transform_5(%arg0: i32) -> (i32, i32) {
    %c0_i32 = arith.constant 0 : i32
    %c0_i32_0 = arith.constant 0 : i32
    return %arg0, %c0_i32 : i32, i32
  }
}

</mosaic_0001>

<llo_original>
// kernel: time_embedding_forward.1
$region0: #{time_embedding_forward.1}
  #allocation0 [shape = 'u32[]', space=smem, size = 0x4, offset = 0x4, fixed_abs, tag = 'smem constant byte address 0x4 - core index']
  #allocation1 [shape = 'u32[72,128]{1,0:T(1,128)}', space=vmem, size = 0x9000, scoped, tag = 'internal scratch']
  %s0 = inlined_call_operand.vmem [shape: f32[8,1], index: 0, kind: input, shape index: {}]
  %s1 = inlined_call_operand.vmem [shape: f32[2,128], index: 1, kind: input, shape index: {}]
  %s2 = inlined_call_operand.hbm [shape: f32[128,128], index: 2, kind: input, shape index: {}]
  %s3 = inlined_call_operand.vmem [shape: f32[2,128], index: 3, kind: input, shape index: {}]
  %s4 = inlined_call_operand.hbm [shape: f32[128,128], index: 4, kind: input, shape index: {}]
  %s5 = inlined_call_operand.hbm [shape: f32[8,128], index: 5, kind: output, shape index: {}]
  %s6 = sld [smem:[#allocation0]]
  $region38: #{time_embedding_forward.1} parent=0
    _
  %s8 = ssub.s32 1, %s6
  %s9 = scalar_select 0, %s8, %s6
  $region1: #{time_embedding_forward.1} parent=0
    #allocation2 [shape = 'u8[65536]{0}', space=vmem, size = 0x10000, scoped, tag = 'input window, operand 2, single buffered']
    #allocation3 [shape = 's32[1]{0}', space=sflag, size = 0x4, scoped, tag = 'scoped memory for time_embedding_forward.1']
    #allocation4 [shape = 's32[1]{0}', space=sflag, size = 0x4, scoped, tag = 'scoped memory for time_embedding_forward.1']
    #allocation5 [shape = 'u8[65536]{0}', space=vmem, size = 0x10000, scoped, tag = 'input window, operand 4, single buffered']
    #allocation6 [shape = 's32[1]{0}', space=sflag, size = 0x4, scoped, tag = 'scoped memory for time_embedding_forward.1']
    #allocation7 [shape = 'u8[4096]{0}', space=vmem, size = 0x1000, scoped, tag = 'output window, operand 0, single buffered']
    %10 = vsyncpa [#allocation3], 0
    %11 = vsyncpa [#allocation6], 0
    %12 = vsyncpa [#allocation4], 0
    // Predicated region
    $region2: #{time_embedding_forward.1} parent=1 // pred_check
      _
    $region3: #{time_embedding_forward.1} parent=1 // pred_check_branch
      %14 = sbr.rel (0) target = $region5
    $region4: #{time_embedding_forward.1} parent=1 // pred_region
      _
    $region5: #{time_embedding_forward.1} parent=1 // pred_fallthru
      _
    // Predicated region
    $region6: #{time_embedding_forward.1} parent=1 // pred_check
      _
    $region7: #{time_embedding_forward.1} parent=1 // pred_check_branch
      %16 = sbr.rel (0) target = $region9
    $region8: #{time_embedding_forward.1} parent=1 // pred_region
      _
    $region9: #{time_embedding_forward.1} parent=1 // pred_fallthru
      _
    // Predicated region
    $region10: #{time_embedding_forward.1} parent=1 // pred_check
      _
    $region11: #{time_embedding_forward.1} parent=1 // pred_check_branch
      %18 = sbr.rel (0) target = $region13
    $region12: #{time_embedding_forward.1} parent=1 // pred_region
      %20 = vsyncadd [#allocation3], 0
      %s21 = sshll.u32 %s2, 4
      %s22 = int_to_ptr.hbm [resolvable:$true] %s21
      %s23 = sshll.u32 [#allocation2], 4
      %s24 = int_to_ptr.vmem [resolvable:$true] %s23
      %29 = dma.hbm_to_vmem [thread:$0]  %s22, 2048, %s24, [#allocation3], 128, 128, 8
    $region13: #{time_embedding_forward.1} parent=1 // pred_fallthru
      _
    // Predicated region
    $region14: #{time_embedding_forward.1} parent=1 // pred_check
      _
    $region15: #{time_embedding_forward.1} parent=1 // pred_check_branch
      %31 = sbr.rel (0) target = $region17
    $region16: #{time_embedding_forward.1} parent=1 // pred_region
      _
    $region17: #{time_embedding_forward.1} parent=1 // pred_fallthru
      _
    // Predicated region
    $region18: #{time_embedding_forward.1} parent=1 // pred_check
      _
    $region19: #{time_embedding_forward.1} parent=1 // pred_check_branch
      %33 = sbr.rel (0) target = $region21
    $region20: #{time_embedding_forward.1} parent=1 // pred_region
      %35 = vsyncadd [#allocation6], 0
      %s36 = sshll.u32 %s4, 4
      %s37 = int_to_ptr.hbm [resolvable:$true] %s36
      %s38 = sshll.u32 [#allocation5], 4
      %s39 = int_to_ptr.vmem [resolvable:$true] %s38
      %44 = dma.hbm_to_vmem [thread:$0]  %s37, 2048, %s39, [#allocation6], 128, 128, 8
    $region21: #{time_embedding_forward.1} parent=1 // pred_fallthru
      _
    // Predicated region
    $region22: #{time_embedding_forward.1} parent=1 // pred_check
      _
    $region23: #{time_embedding_forward.1} parent=1 // pred_check_branch
      %46 = sbr.rel (0) target = $region25
    $region24: #{time_embedding_forward.1} parent=1 // pred_region
      %48 = dma.done [#allocation3], 2048
    $region25: #{time_embedding_forward.1} parent=1 // pred_fallthru
      _
    // Predicated region
    $region26: #{time_embedding_forward.1} parent=1 // pred_check
      _
    $region27: #{time_embedding_forward.1} parent=1 // pred_check_branch
      %50 = sbr.rel (0) target = $region29
    $region28: #{time_embedding_forward.1} parent=1 // pred_region
      %52 = dma.done [#allocation6], 2048
    $region29: #{time_embedding_forward.1} parent=1 // pred_fallthru
      _
    %v53 = vld [vmem:[%s1] sm:$0x1]
    %v54 = vld [vmem:[%s1 + $0x1] sm:$0x1]
    %v55 = vld [vmem:[%s0] sm:$0xff]
    %57 = vset.pattern.permute.xlu0 0
    %58 = vperm.xlu0 %57, %v55
    %v59 = vpop.permute.xlu0 %58
    %v61 = vperm.slane %v53, 0
    %v62 = vmul.f32 %v59, %v61
    %v63 = vperm.slane %v54, 0
    %v64 = vadd.f32 %v62, %v63
    %v65 = vand.u32 2147483647, %v64
    %vm66 = vcmp.le.f32.partialorder %v65, 0.7853982
    %vm67 = vcmp.lt.s32.totalorder %v64, 0
    %v68 = vand.u32 %v64, 2139095040
    %v69 = vshrl.u32 %v68, 23
    %v70 = vsub.s32 %v69, 127
    %v71 = vand.u32 2147483647, %v64
    %v72 = vand.u32 %v71, 8388607
    %v73 = vor.u32 %v72, 8388608
    %v74 = vsub.s32 0, %v73
    %v75 = vadd.s32 %v70, 1
    %vm76 = vcmp.gt.s32.totalorder %v75, 0
    %v77 = vsel %vm76, %v75, 0
    %v78 = vshrl.u32 %v77, 5
    %v79 = vand.u32 %v77, 31
    %v80 = vsub.s32 32, %v79
    %v81 = vshrl.u32 683565275, %v80
    %v82 = vshll.u32 683565275, %v79
    %v83 = vshrl.u32 2475754826, %v80
    %v84 = vor.u32 %v82, %v83
    %v85 = vshll.u32 2475754826, %v79
    %v86 = vshrl.u32 2131351028, %v80
    %v87 = vor.u32 %v85, %v86
    %v88 = vshll.u32 2131351028, %v79
    %v89 = vshrl.u32 2102212464, %v80
    %v90 = vor.u32 %v88, %v89
    %v91 = vshll.u32 2102212464, %v79
    %v92 = vshrl.u32 920167782, %v80
    %v93 = vor.u32 %v91, %v92
    %v94 = vshll.u32 920167782, %v79
    %v95 = vshrl.u32 1326507024, %v80
    %v96 = vor.u32 %v94, %v95
    %vm97 = vcmp.lt.s32.totalorder %v78, 1
    %vm98 = vcmp.lt.s32.totalorder %v78, 2
    %vm99 = vcmp.lt.s32.totalorder %v78, 3
    %vm100 = vcmp.lt.s32.totalorder %v78, 4
    %v101 = vsel %vm97, %v81, %v84
    %v102 = vsel %vm100, %v90, 2102212464
    %v103 = vsel %vm99, %v87, %v102
    %v104 = vsel %vm98, %v101, %v103
    %v105 = vsel %vm97, %v84, %v87
    %v106 = vsel %vm100, %v93, 920167782
    %v107 = vsel %vm99, %v90, %v106
    %v108 = vsel %vm98, %v105, %v107
    %v109 = vsel %vm97, %v87, %v90
    %v110 = vsel %vm100, %v96, 1326507024
    %v111 = vsel %vm99, %v93, %v110
    %v112 = vsel %vm98, %v109, %v111
    %v113 = vshll.u32 %v73, 8
    %v114 = vand.u32 %v113, 65535
    %v115 = vshrl.u32 %v113, 16
    %v116 = vand.u32 %v112, 65535
    %v117 = vshrl.u32 %v112, 16
    %v118 = vmul.u32 %v114, %v116
    %v119 = vmul.u32 %v114, %v117
    %v120 = vmul.u32 %v115, %v116
    %v121 = vmul.u32 %v115, %v117
    %v122 = vshll.u32 %v119, 16
    %v123 = vshrl.u32 %v119, 16
    %v124 = vshll.u32 %v120, 16
    %v125 = vshrl.u32 %v120, 16
    %vm126 = vc.u32 %v118, %v122
    %v127 = vsel %vm126, 1, 0
    %v128 = vadd.s32 %v118, %v122
    %v129 = vadd.s32 %v121, %v127
    %vm130 = vc.u32 %v128, %v124
    %v131 = vsel %vm130, 1, 0
    %v132 = vadd.s32 %v128, %v124
    %v133 = vadd.s32 %v129, %v131
    %v134 = vadd.s32 %v133, %v123
    %v135 = vadd.s32 %v134, %v125
    %v136 = vand.u32 %v113, 65535
    %v137 = vshrl.u32 %v113, 16
    %v138 = vand.u32 %v108, 65535
    %v139 = vshrl.u32 %v108, 16
    %v140 = vmul.u32 %v136, %v138
    %v141 = vmul.u32 %v136, %v139
    %v142 = vmul.u32 %v137, %v138
    %v143 = vmul.u32 %v137, %v139
    %v144 = vshll.u32 %v141, 16
    %v145 = vshrl.u32 %v141, 16
    %v146 = vshll.u32 %v142, 16
    %v147 = vshrl.u32 %v142, 16
    %vm148 = vc.u32 %v140, %v144
    %v149 = vsel %vm148, 1, 0
    %v150 = vadd.s32 %v140, %v144
    %v151 = vadd.s32 %v143, %v149
    %vm152 = vc.u32 %v150, %v146
    %v153 = vsel %vm152, 1, 0
    %v154 = vadd.s32 %v150, %v146
    %v155 = vadd.s32 %v151, %v153
    %v156 = vadd.s32 %v155, %v145
    %v157 = vadd.s32 %v156, %v147
    %v158 = vmul.u32 %v113, %v104
    %v159 = vadd.s32 %v135, %v154
    %vm160 = vc.u32 %v135, %v154
    %v161 = vadd.s32 %v157, 1
    %v162 = vsel %vm160, %v161, %v157
    %v163 = vadd.s32 %v158, %v162
    %v164 = vadd.s32 %v163, 536870912
    %v165 = vshrl.u32 %v164, 30
    %v166 = vshll.u32 %v165, 30
    %v167 = vsub.s32 %v163, %v166
    %vm168 = vcmp.lt.s32.totalorder %v167, 0
    %v169 = vsub.s32 0, %v167
    %v170 = vsel %vm168, %v169, %v167
    %v171 = vclz %v170
    %v172 = vsub.s32 %v171, 2
    %vm173 = vcmp.gt.s32.totalorder 0, %v172
    %v174 = vsel %vm173, 0, %v172
    %v175 = vsub.s32 32, %v174
    %v176 = vshll.u32 %v167, %v174
    %v177 = vshrl.u32 %v159, %v175
    %v178 = vor.u32 %v176, %v177
    %v179 = vsub.s32 4294967266, %v174
    %v180 = vadd.s32 %v179, 127
    %v181 = vshll.u32 %v180, 23
    %v182 = vor.u32 4788187, %v181
    %v183 = vand.u32 2147483647, %v182
    %v185 = vcvt.s32.f32 %v178
    %v186 = vmul.f32 %v185, %v183
    %v187 = vxor.u32 %v186, 2147483648
    %v188 = vsel %vm67, %v187, %v186
    %v189 = vsub.s32 4, %v165
    %v190 = vsel %vm67, %v189, %v165
    %v191 = vsel %vm66, %v64, %v188
    %v192 = vsel %vm66, 0, %v190
    %v193 = vmul.f32 %v191, %v191
    %v194 = vmul.f32 %v193, -0.001358992
    %v195 = vadd.f32 %v194, 0.041655596
    %v196 = vmul.f32 %v193, %v195
    %v197 = vadd.f32 %v196, -0.4999988
    %v198 = vmul.f32 %v193, %v197
    %v199 = vadd.f32 1.0, %v198
    %v200 = vmul.f32 %v191, %v191
    %v201 = vmul.f32 %v200, -0.00019511016
    %v202 = vadd.f32 %v201, 0.008332121
    %v203 = vmul.f32 %v200, %v202
    %v204 = vadd.f32 %v203, -0.16666654
    %v205 = vmul.f32 %v200, %v204
    %v206 = vadd.f32 %v205, 1.0
    %v207 = vmul.f32 %v206, %v191
    %vm208 = vweird.f32 %v64
    %v209 = vadd.s32 %v192, 3
    %v210 = vand.u32 %v209, 3
    %vm211 = vcmp.lt.s32.totalorder %v210, 2
    %vm212 = vcmp.eq.s32.totalorder %v210, 0
    %v213 = vxor.u32 %v207, 2147483648
    %v214 = vsel %vm212, %v199, %v213
    %vm215 = vcmp.eq.s32.totalorder %v210, 2
    %v216 = vxor.u32 %v199, 2147483648
    %v217 = vsel %vm215, %v216, %v207
    %v218 = vsel %vm211, %v214, %v217
    %v219 = vsel %vm208, nan, %v218
    %v220 = vld [vmem:[#allocation2] sm:$0xff]
    %v221 = vld [vmem:[#allocation2 + $0x8] sm:$0xff]
    %v222 = vld [vmem:[#allocation2 + $0x10] sm:$0xff]
    %v223 = vld [vmem:[#allocation2 + $0x18] sm:$0xff]
    %v224 = vld [vmem:[#allocation2 + $0x20] sm:$0xff]
    %v225 = vld [vmem:[#allocation2 + $0x28] sm:$0xff]
    %v226 = vld [vmem:[#allocation2 + $0x30] sm:$0xff]
    %v227 = vld [vmem:[#allocation2 + $0x38] sm:$0xff]
    %v228 = vld [vmem:[#allocation2 + $0x40] sm:$0xff]
    %v229 = vld [vmem:[#allocation2 + $0x48] sm:$0xff]
    %v230 = vld [vmem:[#allocation2 + $0x50] sm:$0xff]
    %v231 = vld [vmem:[#allocation2 + $0x58] sm:$0xff]
    %v232 = vld [vmem:[#allocation2 + $0x60] sm:$0xff]
    %v233 = vld [vmem:[#allocation2 + $0x68] sm:$0xff]
    %v234 = vld [vmem:[#allocation2 + $0x70] sm:$0xff]
    %v235 = vld [vmem:[#allocation2 + $0x78] sm:$0xff]
    %v236 = vld [vmem:[%s3] sm:$0x1]
    %v237 = vperm.slane %v236, 0
    %238 = vmatpush.msra.mxu0 %v235
    %239 = vmatpush.msra.mxu0 %v234
    %240 = vmatpush.msra.mxu0 %v233
    %241 = vmatpush.msra.mxu0 %v232
    %242 = vmatpush.msra.mxu0 %v231
    %243 = vmatpush.msra.mxu0 %v230
    %244 = vmatpush.msra.mxu0 %v229
    %245 = vmatpush.msra.mxu0 %v228
    %246 = vmatpush.msra.mxu0 %v227
    %247 = vmatpush.msra.mxu0 %v226
    %248 = vmatpush.msra.mxu0 %v225
    %249 = vmatpush.msra.mxu0 %v224
    %250 = vmatpush.msra.mxu0 %v223
    %251 = vmatpush.msra.mxu0 %v222
    %252 = vmatpush.msra.mxu0 %v221
    %253 = vmatpush.msra.mxu0 %v220
    %254 = vmatmul.f32.gmra.mxu0 %v219
    %v255 = vpop.f32.mrf.mxu0
    %v256 = vadd.f32 %v237, %v255
    %257 = vdwg.mxu0
    %v258 = vxor.u32 %v256, 2147483648
    %v259 = vmul.f32 %v258, 1.442695
    %v260 = vpow.pop %v259
    %v261 = vadd.f32 %v260, 1.0
    %v262 = vrcp.pop %v261
    %v263 = vmul.f32 %v261, %v262
    %v264 = vsub.f32 1.0, %v263
    %v265 = vmul.f32 %v262, %v264
    %v266 = vadd.f32 %v262, %v265
    %vm267 = vweird.f32 %v261
    %vm268 = vweird.f32 %v262
    %vm269 = vmor %vm267, %vm268
    %v270 = vsel %vm269, %v262, %v266
    %v271 = vand.u32 2147483647, %v261
    %vm272 = vcmp.eq.f32.partialorder %v271, 8.507059e+37
    %v273 = vand.u32 %v261, 2147483648
    %v274 = vor.u32 1.1754944e-38, %v273
    %v275 = vsel %vm272, %v274, %v270
    %v276 = vmul.f32 1.0, %v275
    %v277 = vmul.f32 %v256, %v276
    %v278 = vld [vmem:[#allocation5] sm:$0xff]
    %v279 = vld [vmem:[#allocation5 + $0x8] sm:$0xff]
    %v280 = vld [vmem:[#allocation5 + $0x10] sm:$0xff]
    %v281 = vld [vmem:[#allocation5 + $0x18] sm:$0xff]
    %v282 = vld [vmem:[#allocation5 + $0x20] sm:$0xff]
    %v283 = vld [vmem:[#allocation5 + $0x28] sm:$0xff]
    %v284 = vld [vmem:[#allocation5 + $0x30] sm:$0xff]
    %v285 = vld [vmem:[#allocation5 + $0x38] sm:$0xff]
    %v286 = vld [vmem:[#allocation5 + $0x40] sm:$0xff]
    %v287 = vld [vmem:[#allocation5 + $0x48] sm:$0xff]
    %v288 = vld [vmem:[#allocation5 + $0x50] sm:$0xff]
    %v289 = vld [vmem:[#allocation5 + $0x58] sm:$0xff]
    %v290 = vld [vmem:[#allocation5 + $0x60] sm:$0xff]
    %v291 = vld [vmem:[#allocation5 + $0x68] sm:$0xff]
    %v292 = vld [vmem:[#allocation5 + $0x70] sm:$0xff]
    %v293 = vld [vmem:[#allocation5 + $0x78] sm:$0xff]
    %v294 = vld [vmem:[%s3 + $0x1] sm:$0x1]
    %v295 = vperm.slane %v294, 0
    %296 = vmatpush.msra.mxu0 %v293
    %297 = vmatpush.msra.mxu0 %v292
    %298 = vmatpush.msra.mxu0 %v291
    %299 = vmatpush.msra.mxu0 %v290
    %300 = vmatpush.msra.mxu0 %v289
    %301 = vmatpush.msra.mxu0 %v288
    %302 = vmatpush.msra.mxu0 %v287
    %303 = vmatpush.msra.mxu0 %v286
    %304 = vmatpush.msra.mxu0 %v285
    %305 = vmatpush.msra.mxu0 %v284
    %306 = vmatpush.msra.mxu0 %v283
    %307 = vmatpush.msra.mxu0 %v282
    %308 = vmatpush.msra.mxu0 %v281
    %309 = vmatpush.msra.mxu0 %v280
    %310 = vmatpush.msra.mxu0 %v279
    %311 = vmatpush.msra.mxu0 %v278
    %312 = vmatmul.f32.gmra.mxu0 %v277
    %v313 = vpop.f32.mrf.mxu0
    %v314 = vadd.f32 %v295, %v313
    %315 = vdwg.mxu0
    %316 = vst [vmem:[#allocation7] sm:$0xff] %v314
    // Predicated region
    $region30: #{time_embedding_forward.1} parent=1 // pred_check
      _
    $region31: #{time_embedding_forward.1} parent=1 // pred_check_branch
      %318 = sbr.rel (0) target = $region33
    $region32: #{time_embedding_forward.1} parent=1 // pred_region
      %320 = vsyncadd [#allocation4], 0
      %s322 = sshll.u32 [#allocation7], 4
      %s323 = int_to_ptr.vmem [resolvable:$true] %s322
      %s324 = sshll.u32 %s5, 4
      %s325 = int_to_ptr.hbm [resolvable:$true] %s324
      %327 = dma.vmem_to_hbm [thread:$0]  %s323, 128, %s325, [#allocation4]
    $region33: #{time_embedding_forward.1} parent=1 // pred_fallthru
      _
    // Predicated region
    $region34: #{time_embedding_forward.1} parent=1 // pred_check
      _
    $region35: #{time_embedding_forward.1} parent=1 // pred_check_branch
      %329 = sbr.rel (0) target = $region37
    $region36: #{time_embedding_forward.1} parent=1 // pred_region
      %331 = dma.done [#allocation4], 128
    $region37: #{time_embedding_forward.1} parent=1 // pred_fallthru
      _
    %332 = vsyncpa [#allocation3], 1
    %333 = vsyncpa [#allocation6], 1
    %334 = vsyncpa [#allocation4], 1

</llo_original>
